<compile_context>
chip_gen: v6e
topology: v6e:2x2x1
jax: 0.10.0
libtpu: 0.0.40
codegen_flags: <defaults>
</compile_context>

<pallas_src>
import jax
import jax.numpy as jnp
from jax.experimental import pallas as pl
from jax.experimental.pallas import tpu as pltpu


def _concat_dist_kernel(d_ref, z_ref, o_ref):
    # d_ref: (TR, W, 1) resident distance block
    # z_ref: (TR, W, C) input block
    # o_ref: (TR, W, C+1) output block
    c = z_ref.shape[-1]
    # Two direct sliced stores -- no concatenate, no per-step distance compute.
    o_ref[:, :, 0:c] = z_ref[...]
    o_ref[:, :, c:c + 1] = d_ref[...]


def _pick_rows_per_block(num_rows, width, itemsize):
    """Rows (each a (W, C[+1]) slab) per grid block.

    Sized against *padded* VMEM usage (lane dim pads to 128): roughly
    3 buffers (z, out, dist) x 2 (double-buffering) x ceil(W/8)*8 x 128 x
    itemsize per row, kept well under v7x's 32 MiB scoped VMEM default, and
    preferring >= 2 grid steps so megacore parts get both TensorCores busy.
    """
    vmem_budget = 8 * 1024 * 1024
    padded_row_bytes = (-(-width // 8) * 8) * 128 * itemsize * 3 * 2
    max_rows = max(1, vmem_budget // padded_row_bytes)

    batch = num_rows // width
    candidates = []
    # Whole images per block (largest first).
    for k in range(batch, 0, -1):
        if batch % k == 0 and k * width <= max_rows:
            candidates.append(k * width)
    # Sub-image row tiles (largest first) for very large W.
    for d in range(1, width + 1):
        if width % d == 0 and (width // d) < width and (width // d) <= max_rows:
            candidates.append(width // d)
    for rows in candidates:
        if num_rows // rows >= 2:   # keep at least 2 grid steps when possible
            return rows
    return candidates[0] if candidates else 1


def concat_dist_2d(z_2d):
    batch, width, width2, chan = z_2d.shape
    assert width == width2, "ConcatDist2D expects a square (B, W, W, C) latent"
    dtype = z_2d.dtype
    itemsize = z_2d.dtype.itemsize

    num_rows = batch * width
    rows_per_block = _pick_rows_per_block(num_rows, width, itemsize)
    grid = (num_rows // rows_per_block,)

    # Precompute the normalized |i - j| column once (wrapper-side, tiny),
    # tiled to the block's row extent so it stays VMEM-resident over the grid.
    jj = jax.lax.broadcasted_iota(jnp.float32, (width, width), 0)
    ii = jax.lax.broadcasted_iota(jnp.float32, (width, width), 1)
    denom = jnp.float32(max(width - 1, 1))              # guard W == 1
    dist = (jnp.abs(ii - jj) / denom).astype(dtype)[:, :, None]   # (W, W, 1)
    if rows_per_block >= width:
        dist = jnp.tile(dist, (rows_per_block // width, 1, 1))    # (TR, W, 1)
    n_dist_blocks = dist.shape[0] // rows_per_block
    if n_dist_blocks == 1:
        dist_index = lambda t: (0, 0, 0)                # fully resident
    else:
        dist_index = lambda t: (t % n_dist_blocks, 0, 0)  # cycles over j-tiles

    # Fold batch and row dims (free: leading-dim merge only).
    z_rows = z_2d.reshape(num_rows, width, chan)

    out = pl.pallas_call(
        _concat_dist_kernel,
        out_shape=jax.ShapeDtypeStruct((num_rows, width, chan + 1), dtype),
        grid=grid,
        in_specs=[
            pl.BlockSpec((rows_per_block, width, 1), dist_index),
            pl.BlockSpec((rows_per_block, width, chan), lambda t: (t, 0, 0)),
        ],
        out_specs=pl.BlockSpec((rows_per_block, width, chan + 1),
                               lambda t: (t, 0, 0)),
        compiler_params=pltpu.CompilerParams(
            dimension_semantics=("parallel",),
            vmem_limit_bytes=32 * 1024 * 1024,
        ),
    )(dist, z_rows)
    return out.reshape(batch, width, width, chan + 1)


def _reference(z_2d):
    batch, width, _, chan = z_2d.shape
    ii = jnp.arange(width, dtype=jnp.float32)[None, :]
    jj = jnp.arange(width, dtype=jnp.float32)[:, None]
    dist = (jnp.abs(ii - jj) / jnp.float32(max(width - 1, 1))).astype(z_2d.dtype)
    dist = jnp.broadcast_to(dist[None, :, :, None], (batch, width, width, 1))
    return jnp.concatenate([z_2d, dist], axis=-1)


if __name__ == "__main__":
    # ConcatDist2D has no learnable parameters; nothing to initialize.
    key = jax.random.PRNGKey(0)
    B, W, C = 2, 16, 4
    z_2d = jax.random.normal(key, (B, W, W, C), dtype=jnp.float32)

    out = jax.jit(concat_dist_2d)(z_2d)
    out = jax.block_until_ready(out)

    ref = _reference(z_2d)
    assert out.shape == (B, W, W, C + 1), out.shape
    assert out.dtype == z_2d.dtype
    assert jnp.allclose(out, ref, atol=1e-6, rtol=1e-6)
    print("KERNEL_OK")
</pallas_src>

<mosaic_0001>
module attributes {stable_mosaic.version = 11 : i64} {
  func.func @_concat_dist_kernel(%arg0: i32, %arg1: memref<16x16x1xf32, #tpu.memory_space<vmem>>, %arg2: memref<16x16x4xf32, #tpu.memory_space<vmem>>, %arg3: memref<16x16x5xf32, #tpu.memory_space<vmem>>) attributes {dimension_semantics = [#tpu.dimension_semantics<parallel>], iteration_bounds = array<i64: 2>, scalar_prefetch = 0 : i64, scratch_operands = 0 : i64, tpu.core_type = #tpu.core_type<tc>, window_params = [{pipeline_mode = #tpu.pipeline_mode<synchronous>, transform_indices = @transform_0, window_bounds = array<i64: 16, 16, 1>}, {transform_indices = @transform_1, window_bounds = array<i64: 16, 16, 4>}, {transform_indices = @transform_2, window_bounds = array<i64: 16, 16, 5>}]} {
    %c0 = arith.constant 0 : index
    %c0_0 = arith.constant 0 : index
    %c0_1 = arith.constant 0 : index
    %0 = vector.load %arg2[%c0, %c0_0, %c0_1] : memref<16x16x4xf32, #tpu.memory_space<vmem>>, vector<16x16x4xf32>
    %c0_2 = arith.constant 0 : index
    %c0_3 = arith.constant 0 : index
    %c0_4 = arith.constant 0 : index
    %1 = vector.load %arg3[%c0_2, %c0_3, %c0_4] : memref<16x16x5xf32, #tpu.memory_space<vmem>>, vector<16x16x4xf32>
    tpu.vector_store %arg3[%c0_2, %c0_3, %c0_4], %0 {strides = array<i32>} : memref<16x16x5xf32, #tpu.memory_space<vmem>>, vector<16x16x4xf32>,
    %c0_5 = arith.constant 0 : index
    %c0_6 = arith.constant 0 : index
    %c0_7 = arith.constant 0 : index
    %2 = vector.load %arg1[%c0_5, %c0_6, %c0_7] : memref<16x16x1xf32, #tpu.memory_space<vmem>>, vector<16x16x1xf32>
    %c0_8 = arith.constant 0 : index
    %c0_9 = arith.constant 0 : index
    %c4 = arith.constant 4 : index
    %3 = vector.load %arg3[%c0_8, %c0_9, %c4] : memref<16x16x5xf32, #tpu.memory_space<vmem>>, vector<16x16x1xf32>
    tpu.vector_store %arg3[%c0_8, %c0_9, %c4], %2 {strides = array<i32>} : memref<16x16x5xf32, #tpu.memory_space<vmem>>, vector<16x16x1xf32>,
    return
  }
  func.func @transform_0(%arg0: i32) -> (i32, i32, i32) {
    %c0_i32 = arith.constant 0 : i32
    %c0_i32_0 = arith.constant 0 : i32
    %c0_i32_1 = arith.constant 0 : i32
    %c0_i32_2 = arith.constant 0 : i32
    return %c0_i32, %c0_i32_0, %c0_i32_1 : i32, i32, i32
  }
  func.func @transform_1(%arg0: i32) -> (i32, i32, i32) {
    %c0_i32 = arith.constant 0 : i32
    %c0_i32_0 = arith.constant 0 : i32
    %c0_i32_1 = arith.constant 0 : i32
    return %arg0, %c0_i32, %c0_i32_0 : i32, i32, i32
  }
  func.func @transform_2(%arg0: i32) -> (i32, i32, i32) {
    %c0_i32 = arith.constant 0 : i32
    %c0_i32_0 = arith.constant 0 : i32
    %c0_i32_1 = arith.constant 0 : i32
    return %arg0, %c0_i32, %c0_i32_0 : i32, i32, i32
  }
}

</mosaic_0001>

<llo_original>
// kernel: concat_dist_2d.1
$region0: #{concat_dist_2d.1}
  #allocation0 [shape = 'u32[]', space=smem, size = 0x4, offset = 0x4, fixed_abs, tag = 'smem constant byte address 0x4 - core index']
  #allocation1 [shape = 'u32[144,128]{1,0:T(1,128)}', space=vmem, size = 0x12000, scoped, tag = 'internal scratch']
  %s0 = inlined_call_operand.vmem [shape: f32[16,16,1], index: 0, kind: input, shape index: {}]
  %s1 = inlined_call_operand.vmem [shape: f32[32,16,4], index: 1, kind: input, shape index: {}]
  %s2 = inlined_call_operand.vmem [shape: f32[32,16,5], index: 2, kind: output, shape index: {}]
  %s3 = sld [smem:[#allocation0]]
  $region41: #{concat_dist_2d.1} parent=0
    _
  %s5 = ssub.s32 1, %s3
  %s6 = scalar_select 0, %s5, %s3
  loop: start=0, step=1, limit=4
  $region2: #{concat_dist_2d.1} parent=0 // loop_pre_header
    _
  $region3: #{concat_dist_2d.1} parent=0 // loop_header
    %s8 = sphi 0, %s12
    %p9 = scmp.ge.s32.totalorder %s8, 4
    %s16 = sphi 0, %s16
    %s18 = sphi 0, %s16
    %s19 = sphi 0, %s18
    %s33 = sphi 0, %s19
    %s39 = sphi 0, %s41
    %s42 = sphi 0, %s39
    %s43 = sphi 0, %s42
    %s59 = sphi 0, %s43
    %s65 = sphi 0, %s67
    %s68 = sphi 0, %s65
    %s69 = sphi 0, %s68
    %s85 = sphi 0, %s69
  $region4: #{concat_dist_2d.1} parent=0 // loop_header_branch
    %11 = sbr.rel (%p9) target = $region8
  $region5: #{concat_dist_2d.1} parent=0 // loop_body
    %s13 = ssub.s32 %s8, 1
    %s14 = ssub.s32 %s8, 2
    %s15 = sadd.s32 %s8, 1
    %s17 = sadd.s32 %s16, 1
    %p20 = scmp.eq.s32.totalorder %s8, 1
    %p21 = scmp.ne.s32.totalorder %s16, %s18
    %p22 = scmp.eq.s32.totalorder %s8, 0
    %p23 = por %p21, %p22
    %p24 = scmp.ne.s32.totalorder %s16, %s18
    %p25 = scmp.eq.s32.totalorder %s13, 1
    %p26 = por %p24, %p25
    %p27 = scmp.ne.s32.totalorder %s18, %s19
    %p28 = scmp.eq.s32.totalorder %s13, 0
    %p29 = por %p27, %p28
    %p30 = scmp.ne.s32.totalorder %s18, %s19
    %p31 = scmp.eq.s32.totalorder %s14, 1
    %p32 = por %p30, %p31
    %p34 = scmp.ne.s32.totalorder %s19, %s33
    %p35 = scmp.eq.s32.totalorder %s14, 0
    %p36 = por %p34, %p35
    %s37 = ssub.s32 %s8, %s15
    %p38 = scmp.eq.s32.totalorder %s37, 0
    %s40 = sadd.s32 %s39, 1
    %s41 = scalar_select %p38, %s39, %s40
    %p44 = pneg %p38
    %p45 = scmp.eq.s32.totalorder %s8, 1
    %p46 = por %p44, %p45
    %p47 = scmp.ne.s32.totalorder %s39, %s42
    %p48 = scmp.eq.s32.totalorder %s8, 0
    %p49 = por %p47, %p48
    %p50 = scmp.ne.s32.totalorder %s39, %s42
    %p51 = scmp.eq.s32.totalorder %s13, 1
    %p52 = por %p50, %p51
    %p53 = scmp.ne.s32.totalorder %s42, %s43
    %p54 = scmp.eq.s32.totalorder %s13, 0
    %p55 = por %p53, %p54
    %p56 = scmp.ne.s32.totalorder %s42, %s43
    %p57 = scmp.eq.s32.totalorder %s14, 1
    %p58 = por %p56, %p57
    %p60 = scmp.ne.s32.totalorder %s43, %s59
    %p61 = scmp.eq.s32.totalorder %s14, 0
    %p62 = por %p60, %p61
    %s63 = ssub.s32 %s8, %s15
    %p64 = scmp.eq.s32.totalorder %s63, 0
    %s66 = sadd.s32 %s65, 1
    %s67 = scalar_select %p64, %s65, %s66
    %p70 = pneg %p64
    %p71 = scmp.eq.s32.totalorder %s8, 1
    %p72 = por %p70, %p71
    %p73 = scmp.ne.s32.totalorder %s65, %s68
    %p74 = scmp.eq.s32.totalorder %s8, 0
    %p75 = por %p73, %p74
    %p76 = scmp.ne.s32.totalorder %s65, %s68
    %p77 = scmp.eq.s32.totalorder %s13, 1
    %p78 = por %p76, %p77
    %p79 = scmp.ne.s32.totalorder %s68, %s69
    %p80 = scmp.eq.s32.totalorder %s13, 0
    %p81 = por %p79, %p80
    %p82 = scmp.ne.s32.totalorder %s68, %s69
    %p83 = scmp.eq.s32.totalorder %s14, 1
    %p84 = por %p82, %p83
    %p86 = scmp.ne.s32.totalorder %s69, %s85
    %p87 = scmp.eq.s32.totalorder %s14, 0
    %p88 = por %p86, %p87
    %p89 = scmp.le.s32.totalorder 1, %s8
    %p90 = scmp.lt.s32.totalorder %s8, 3
    %p91 = pnand %p89, %p90
    %p92 = pneg %p91
    // Predicated region
    $region9: #{concat_dist_2d.1} parent=5 // pred_check
      _
    $region10: #{concat_dist_2d.1} parent=5 // pred_check_branch
      %94 = sbr.rel (%p91) target = $region12
    $region11: #{concat_dist_2d.1} parent=5 // pred_region
      %s95 = ssub.s32 %s8, 1
      // Predicated region
      $region13: #{concat_dist_2d.1} parent=11 // pred_check
        %p96 = pneg %p29
      $region14: #{concat_dist_2d.1} parent=11 // pred_check_branch
        %98 = sbr.rel (%p96) target = $region16
      $region15: #{concat_dist_2d.1} parent=11 // pred_region
        _
      $region16: #{concat_dist_2d.1} parent=11 // pred_fallthru
        _
    $region12: #{concat_dist_2d.1} parent=5 // pred_fallthru
      _
    %p99 = scmp.lt.s32.totalorder %s8, 2
    // Predicated region
    $region17: #{concat_dist_2d.1} parent=5 // pred_check
      %p100 = pneg %p99
    $region18: #{concat_dist_2d.1} parent=5 // pred_check_branch
      %102 = sbr.rel (%p100) target = $region20
    $region19: #{concat_dist_2d.1} parent=5 // pred_region
      // Predicated region
      $region21: #{concat_dist_2d.1} parent=19 // pred_check
        %p103 = pneg %p49
      $region22: #{concat_dist_2d.1} parent=19 // pred_check_branch
        %105 = sbr.rel (%p103) target = $region24
      $region23: #{concat_dist_2d.1} parent=19 // pred_region
        %s106 = smul.u32 16, %s8
        %p107 = scmp.lt.s32.totalorder %s106, 31
        %s108 = scalar_select %p107, %s106, 31
        %s109 = smul.addr %s108, 2
        %s110 = smul.addr %s109, 8
        %s111 = scalar_lea.vmem %s1, %s110
        %s112 = smul.u32 16, %s8
      $region24: #{concat_dist_2d.1} parent=19 // pred_fallthru
        _
    $region20: #{concat_dist_2d.1} parent=5 // pred_fallthru
      _
    %p113 = scmp.le.s32.totalorder 1, %s8
    %p114 = scmp.lt.s32.totalorder %s8, 3
    %p115 = pnand %p113, %p114
    %p116 = pneg %p115
    // Predicated region
    $region25: #{concat_dist_2d.1} parent=5 // pred_check
      _
    $region26: #{concat_dist_2d.1} parent=5 // pred_check_branch
      %118 = sbr.rel (%p115) target = $region28
    $region27: #{concat_dist_2d.1} parent=5 // pred_region
      %s119 = ssub.s32 %s8, 1
      %p120 = pneg %p29
      %p121 = pneg %p26
      %s122 = smul.u32 16, %s13
      %p123 = scmp.lt.s32.totalorder %s122, 31
      %s124 = scalar_select %p123, %s122, 31
      %s125 = smul.addr %s124, 2
      %s126 = smul.addr %s125, 8
      %s127 = scalar_lea.vmem %s1, %s126
      %p128 = pneg %p55
      %p129 = pneg %p52
      %p130 = pneg %p81
      %p131 = pneg %p78
      %s132 = smul.u32 16, %s13
      %p133 = scmp.lt.s32.totalorder %s132, 31
      %s134 = scalar_select %p133, %s132, 31
      %s135 = smul.addr %s134, 2
      %s136 = smul.addr %s135, 8
      %s137 = scalar_lea.vmem %s2, %s136
      %s138 = smul.u32 16, %s13
      %p139 = scmp.lt.s32.totalorder %s138, 31
      %s140 = scalar_select %p139, %s138, 31
      %s141 = smul.addr %s140, 2
      %s142 = smul.addr %s141, 8
      %s143 = scalar_lea.vmem %s1, %s142
      %s144 = smul.u32 16, %s13
      %s145 = smul.u32 16, %s13
      %p146 = scmp.lt.s32.totalorder %s145, 31
      %s147 = scalar_select %p146, %s145, 31
      %s148 = smul.addr %s147, 2
      %s149 = smul.addr %s148, 8
      %s150 = scalar_lea.vmem %s2, %s149
      %s151 = smul.u32 16, %s13
      %v152 = vld [vmem:[%s143] sm:$0xff]
      %v153 = vld [vmem:[%s143 + $0x8] sm:$0xff]
      %v154 = vld [vmem:[%s143 + $0x10] sm:$0xff]
      %v155 = vld [vmem:[%s143 + $0x18] sm:$0xff]
      %v156 = vld [vmem:[%s143 + $0x20] sm:$0xff]
      %v157 = vld [vmem:[%s143 + $0x28] sm:$0xff]
      %v158 = vld [vmem:[%s143 + $0x30] sm:$0xff]
      %v159 = vld [vmem:[%s143 + $0x38] sm:$0xff]
      %v160 = vld [vmem:[%s143 + $0x40] sm:$0xff]
      %v161 = vld [vmem:[%s143 + $0x48] sm:$0xff]
      %v162 = vld [vmem:[%s143 + $0x50] sm:$0xff]
      %v163 = vld [vmem:[%s143 + $0x58] sm:$0xff]
      %v164 = vld [vmem:[%s143 + $0x60] sm:$0xff]
      %v165 = vld [vmem:[%s143 + $0x68] sm:$0xff]
      %v166 = vld [vmem:[%s143 + $0x70] sm:$0xff]
      %v167 = vld [vmem:[%s143 + $0x78] sm:$0xff]
      %v168 = vld [vmem:[%s143 + $0x80] sm:$0xff]
      %v169 = vld [vmem:[%s143 + $0x88] sm:$0xff]
      %v170 = vld [vmem:[%s143 + $0x90] sm:$0xff]
      %v171 = vld [vmem:[%s143 + $0x98] sm:$0xff]
      %v172 = vld [vmem:[%s143 + $0xa0] sm:$0xff]
      %v173 = vld [vmem:[%s143 + $0xa8] sm:$0xff]
      %v174 = vld [vmem:[%s143 + $0xb0] sm:$0xff]
      %v175 = vld [vmem:[%s143 + $0xb8] sm:$0xff]
      %v176 = vld [vmem:[%s143 + $0xc0] sm:$0xff]
      %v177 = vld [vmem:[%s143 + $0xc8] sm:$0xff]
      %v178 = vld [vmem:[%s143 + $0xd0] sm:$0xff]
      %v179 = vld [vmem:[%s143 + $0xd8] sm:$0xff]
      %v180 = vld [vmem:[%s143 + $0xe0] sm:$0xff]
      %v181 = vld [vmem:[%s143 + $0xe8] sm:$0xff]
      %v182 = vld [vmem:[%s143 + $0xf0] sm:$0xff]
      %v183 = vld [vmem:[%s143 + $0xf8] sm:$0xff]
      %vm184 = vcmask 31744
      %185 = vst.msk [vmem:[%s150] sm:$0xff] %vm184, %v152
      %186 = vst.msk [vmem:[%s150 + $0x8] sm:$0xff] %vm184, %v153
      %187 = vst.msk [vmem:[%s150 + $0x10] sm:$0xff] %vm184, %v154
      %188 = vst.msk [vmem:[%s150 + $0x18] sm:$0xff] %vm184, %v155
      %189 = vst.msk [vmem:[%s150 + $0x20] sm:$0xff] %vm184, %v156
      %190 = vst.msk [vmem:[%s150 + $0x28] sm:$0xff] %vm184, %v157
      %191 = vst.msk [vmem:[%s150 + $0x30] sm:$0xff] %vm184, %v158
      %192 = vst.msk [vmem:[%s150 + $0x38] sm:$0xff] %vm184, %v159
      %193 = vst.msk [vmem:[%s150 + $0x40] sm:$0xff] %vm184, %v160
      %194 = vst.msk [vmem:[%s150 + $0x48] sm:$0xff] %vm184, %v161
      %195 = vst.msk [vmem:[%s150 + $0x50] sm:$0xff] %vm184, %v162
      %196 = vst.msk [vmem:[%s150 + $0x58] sm:$0xff] %vm184, %v163
      %197 = vst.msk [vmem:[%s150 + $0x60] sm:$0xff] %vm184, %v164
      %198 = vst.msk [vmem:[%s150 + $0x68] sm:$0xff] %vm184, %v165
      %199 = vst.msk [vmem:[%s150 + $0x70] sm:$0xff] %vm184, %v166
      %200 = vst.msk [vmem:[%s150 + $0x78] sm:$0xff] %vm184, %v167
      %201 = vst.msk [vmem:[%s150 + $0x80] sm:$0xff] %vm184, %v168
      %202 = vst.msk [vmem:[%s150 + $0x88] sm:$0xff] %vm184, %v169
      %203 = vst.msk [vmem:[%s150 + $0x90] sm:$0xff] %vm184, %v170
      %204 = vst.msk [vmem:[%s150 + $0x98] sm:$0xff] %vm184, %v171
      %205 = vst.msk [vmem:[%s150 + $0xa0] sm:$0xff] %vm184, %v172
      %206 = vst.msk [vmem:[%s150 + $0xa8] sm:$0xff] %vm184, %v173
      %207 = vst.msk [vmem:[%s150 + $0xb0] sm:$0xff] %vm184, %v174
      %208 = vst.msk [vmem:[%s150 + $0xb8] sm:$0xff] %vm184, %v175
      %209 = vst.msk [vmem:[%s150 + $0xc0] sm:$0xff] %vm184, %v176
      %210 = vst.msk [vmem:[%s150 + $0xc8] sm:$0xff] %vm184, %v177
      %211 = vst.msk [vmem:[%s150 + $0xd0] sm:$0xff] %vm184, %v178
      %212 = vst.msk [vmem:[%s150 + $0xd8] sm:$0xff] %vm184, %v179
      %213 = vst.msk [vmem:[%s150 + $0xe0] sm:$0xff] %vm184, %v180
      %214 = vst.msk [vmem:[%s150 + $0xe8] sm:$0xff] %vm184, %v181
      %215 = vst.msk [vmem:[%s150 + $0xf0] sm:$0xff] %vm184, %v182
      %216 = vst.msk [vmem:[%s150 + $0xf8] sm:$0xff] %vm184, %v183
      %v217 = vld [vmem:[%s0] sm:$0xff]
      %v218 = vld [vmem:[%s0 + $0x8] sm:$0xff]
      %v219 = vld [vmem:[%s0 + $0x10] sm:$0xff]
      %v220 = vld [vmem:[%s0 + $0x18] sm:$0xff]
      %v221 = vld [vmem:[%s0 + $0x20] sm:$0xff]
      %v222 = vld [vmem:[%s0 + $0x28] sm:$0xff]
      %v223 = vld [vmem:[%s0 + $0x30] sm:$0xff]
      %v224 = vld [vmem:[%s0 + $0x38] sm:$0xff]
      %v225 = vld [vmem:[%s0 + $0x40] sm:$0xff]
      %v226 = vld [vmem:[%s0 + $0x48] sm:$0xff]
      %v227 = vld [vmem:[%s0 + $0x50] sm:$0xff]
      %v228 = vld [vmem:[%s0 + $0x58] sm:$0xff]
      %v229 = vld [vmem:[%s0 + $0x60] sm:$0xff]
      %v230 = vld [vmem:[%s0 + $0x68] sm:$0xff]
      %v231 = vld [vmem:[%s0 + $0x70] sm:$0xff]
      %v232 = vld [vmem:[%s0 + $0x78] sm:$0xff]
      %v233 = vld [vmem:[%s0 + $0x80] sm:$0xff]
      %v234 = vld [vmem:[%s0 + $0x88] sm:$0xff]
      %v235 = vld [vmem:[%s0 + $0x90] sm:$0xff]
      %v236 = vld [vmem:[%s0 + $0x98] sm:$0xff]
      %v237 = vld [vmem:[%s0 + $0xa0] sm:$0xff]
      %v238 = vld [vmem:[%s0 + $0xa8] sm:$0xff]
      %v239 = vld [vmem:[%s0 + $0xb0] sm:$0xff]
      %v240 = vld [vmem:[%s0 + $0xb8] sm:$0xff]
      %v241 = vld [vmem:[%s0 + $0xc0] sm:$0xff]
      %v242 = vld [vmem:[%s0 + $0xc8] sm:$0xff]
      %v243 = vld [vmem:[%s0 + $0xd0] sm:$0xff]
      %v244 = vld [vmem:[%s0 + $0xd8] sm:$0xff]
      %v245 = vld [vmem:[%s0 + $0xe0] sm:$0xff]
      %v246 = vld [vmem:[%s0 + $0xe8] sm:$0xff]
      %v247 = vld [vmem:[%s0 + $0xf0] sm:$0xff]
      %v248 = vld [vmem:[%s0 + $0xf8] sm:$0xff]
      %281 = vrot.lane.b32.xlu0 %v217, 4
      %v282 = vpop.permute.xlu0 %281
      %283 = vrot.lane.b32.xlu0 %v218, 4
      %v284 = vpop.permute.xlu0 %283
      %285 = vrot.lane.b32.xlu0 %v219, 4
      %v286 = vpop.permute.xlu0 %285
      %287 = vrot.lane.b32.xlu0 %v220, 4
      %v288 = vpop.permute.xlu0 %287
      %289 = vrot.lane.b32.xlu0 %v221, 4
      %v290 = vpop.permute.xlu0 %289
      %291 = vrot.lane.b32.xlu0 %v222, 4
      %v292 = vpop.permute.xlu0 %291
      %293 = vrot.lane.b32.xlu0 %v223, 4
      %v294 = vpop.permute.xlu0 %293
      %295 = vrot.lane.b32.xlu0 %v224, 4
      %v296 = vpop.permute.xlu0 %295
      %297 = vrot.lane.b32.xlu0 %v225, 4
      %v298 = vpop.permute.xlu0 %297
      %299 = vrot.lane.b32.xlu0 %v226, 4
      %v300 = vpop.permute.xlu0 %299
      %301 = vrot.lane.b32.xlu0 %v227, 4
      %v302 = vpop.permute.xlu0 %301
      %303 = vrot.lane.b32.xlu0 %v228, 4
      %v304 = vpop.permute.xlu0 %303
      %305 = vrot.lane.b32.xlu0 %v229, 4
      %v306 = vpop.permute.xlu0 %305
      %307 = vrot.lane.b32.xlu0 %v230, 4
      %v308 = vpop.permute.xlu0 %307
      %309 = vrot.lane.b32.xlu0 %v231, 4
      %v310 = vpop.permute.xlu0 %309
      %311 = vrot.lane.b32.xlu0 %v232, 4
      %v312 = vpop.permute.xlu0 %311
      %313 = vrot.lane.b32.xlu0 %v233, 4
      %v314 = vpop.permute.xlu0 %313
      %315 = vrot.lane.b32.xlu0 %v234, 4
      %v316 = vpop.permute.xlu0 %315
      %317 = vrot.lane.b32.xlu0 %v235, 4
      %v318 = vpop.permute.xlu0 %317
      %319 = vrot.lane.b32.xlu0 %v236, 4
      %v320 = vpop.permute.xlu0 %319
      %321 = vrot.lane.b32.xlu0 %v237, 4
      %v322 = vpop.permute.xlu0 %321
      %323 = vrot.lane.b32.xlu0 %v238, 4
      %v324 = vpop.permute.xlu0 %323
      %325 = vrot.lane.b32.xlu0 %v239, 4
      %v326 = vpop.permute.xlu0 %325
      %327 = vrot.lane.b32.xlu0 %v240, 4
      %v328 = vpop.permute.xlu0 %327
      %329 = vrot.lane.b32.xlu0 %v241, 4
      %v330 = vpop.permute.xlu0 %329
      %331 = vrot.lane.b32.xlu0 %v242, 4
      %v332 = vpop.permute.xlu0 %331
      %333 = vrot.lane.b32.xlu0 %v243, 4
      %v334 = vpop.permute.xlu0 %333
      %335 = vrot.lane.b32.xlu0 %v244, 4
      %v336 = vpop.permute.xlu0 %335
      %337 = vrot.lane.b32.xlu0 %v245, 4
      %v338 = vpop.permute.xlu0 %337
      %339 = vrot.lane.b32.xlu0 %v246, 4
      %v340 = vpop.permute.xlu0 %339
      %341 = vrot.lane.b32.xlu0 %v247, 4
      %v342 = vpop.permute.xlu0 %341
      %343 = vrot.lane.b32.xlu0 %v248, 4
      %v344 = vpop.permute.xlu0 %343
      %vm377 = vcmask 39968
      %378 = vst.msk [vmem:[%s150] sm:$0xff] %vm377, %v282
      %379 = vst.msk [vmem:[%s150 + $0x8] sm:$0xff] %vm377, %v284
      %380 = vst.msk [vmem:[%s150 + $0x10] sm:$0xff] %vm377, %v286
      %381 = vst.msk [vmem:[%s150 + $0x18] sm:$0xff] %vm377, %v288
      %382 = vst.msk [vmem:[%s150 + $0x20] sm:$0xff] %vm377, %v290
      %383 = vst.msk [vmem:[%s150 + $0x28] sm:$0xff] %vm377, %v292
      %384 = vst.msk [vmem:[%s150 + $0x30] sm:$0xff] %vm377, %v294
      %385 = vst.msk [vmem:[%s150 + $0x38] sm:$0xff] %vm377, %v296
      %386 = vst.msk [vmem:[%s150 + $0x40] sm:$0xff] %vm377, %v298
      %387 = vst.msk [vmem:[%s150 + $0x48] sm:$0xff] %vm377, %v300
      %388 = vst.msk [vmem:[%s150 + $0x50] sm:$0xff] %vm377, %v302
      %389 = vst.msk [vmem:[%s150 + $0x58] sm:$0xff] %vm377, %v304
      %390 = vst.msk [vmem:[%s150 + $0x60] sm:$0xff] %vm377, %v306
      %391 = vst.msk [vmem:[%s150 + $0x68] sm:$0xff] %vm377, %v308
      %392 = vst.msk [vmem:[%s150 + $0x70] sm:$0xff] %vm377, %v310
      %393 = vst.msk [vmem:[%s150 + $0x78] sm:$0xff] %vm377, %v312
      %394 = vst.msk [vmem:[%s150 + $0x80] sm:$0xff] %vm377, %v314
      %395 = vst.msk [vmem:[%s150 + $0x88] sm:$0xff] %vm377, %v316
      %396 = vst.msk [vmem:[%s150 + $0x90] sm:$0xff] %vm377, %v318
      %397 = vst.msk [vmem:[%s150 + $0x98] sm:$0xff] %vm377, %v320
      %398 = vst.msk [vmem:[%s150 + $0xa0] sm:$0xff] %vm377, %v322
      %399 = vst.msk [vmem:[%s150 + $0xa8] sm:$0xff] %vm377, %v324
      %400 = vst.msk [vmem:[%s150 + $0xb0] sm:$0xff] %vm377, %v326
      %401 = vst.msk [vmem:[%s150 + $0xb8] sm:$0xff] %vm377, %v328
      %402 = vst.msk [vmem:[%s150 + $0xc0] sm:$0xff] %vm377, %v330
      %403 = vst.msk [vmem:[%s150 + $0xc8] sm:$0xff] %vm377, %v332
      %404 = vst.msk [vmem:[%s150 + $0xd0] sm:$0xff] %vm377, %v334
      %405 = vst.msk [vmem:[%s150 + $0xd8] sm:$0xff] %vm377, %v336
      %406 = vst.msk [vmem:[%s150 + $0xe0] sm:$0xff] %vm377, %v338
      %407 = vst.msk [vmem:[%s150 + $0xe8] sm:$0xff] %vm377, %v340
      %408 = vst.msk [vmem:[%s150 + $0xf0] sm:$0xff] %vm377, %v342
      %409 = vst.msk [vmem:[%s150 + $0xf8] sm:$0xff] %vm377, %v344
      %s410 = smul.u32 16, %s13
      %p411 = scmp.lt.s32.totalorder %s410, 31
      %s412 = scalar_select %p411, %s410, 31
      %s413 = smul.addr %s412, 2
      %s414 = smul.addr %s413, 8
      %s415 = scalar_lea.vmem %s2, %s414
      // Predicated region
      $region29: #{concat_dist_2d.1} parent=27 // pred_check
        %p416 = pneg %p78
      $region30: #{concat_dist_2d.1} parent=27 // pred_check_branch
        %418 = sbr.rel (%p416) target = $region32
      $region31: #{concat_dist_2d.1} parent=27 // pred_region
        %s419 = smul.u32 16, %s13
      $region32: #{concat_dist_2d.1} parent=27 // pred_fallthru
        _
    $region28: #{concat_dist_2d.1} parent=5 // pred_fallthru
      _
    %p420 = scmp.le.s32.totalorder 2, %s8
    // Predicated region
    $region33: #{concat_dist_2d.1} parent=5 // pred_check
      %p421 = pneg %p420
    $region34: #{concat_dist_2d.1} parent=5 // pred_check_branch
      %423 = sbr.rel (%p421) target = $region36
    $region35: #{concat_dist_2d.1} parent=5 // pred_region
      %s424 = ssub.s32 %s8, 2
      // Predicated region
      $region37: #{concat_dist_2d.1} parent=35 // pred_check
        %p425 = pneg %p84
      $region38: #{concat_dist_2d.1} parent=35 // pred_check_branch
        %427 = sbr.rel (%p425) target = $region40
      $region39: #{concat_dist_2d.1} parent=35 // pred_region
        %s428 = smul.u32 16, %s14
        %p429 = scmp.lt.s32.totalorder %s428, 31
        %s430 = scalar_select %p429, %s428, 31
        %s431 = smul.addr %s430, 2
        %s432 = smul.addr %s431, 8
        %s433 = scalar_lea.vmem %s2, %s432
      $region40: #{concat_dist_2d.1} parent=35 // pred_fallthru
        _
    $region36: #{concat_dist_2d.1} parent=5 // pred_fallthru
      _
  $region6: #{concat_dist_2d.1} parent=0 // loop_footer
    %s12 = sadd.s32 1, %s8
  $region7: #{concat_dist_2d.1} parent=0 // loop_footer_branch
    %7 = sbr.rel target = $region3
  $region8: #{concat_dist_2d.1} parent=0 // loop_exit
    _

</llo_original>
